<compile_context>
chip_gen: v7x
topology: tpu7x:2x2x1
jax: 0.10.0
libtpu: 0.0.40
codegen_flags: <defaults>
</compile_context>

<pallas_src>
import jax
import jax.numpy as jnp
from jax.experimental import pallas as pl
from jax.experimental.pallas import tpu as pltpu

_LANES = 128
_TILE_R = 1024  # rows per grid step: 2 bufs x (in+out) x 1024 x 128 x 4B ~= 2 MiB VMEM


def _energy_kernel(x_ref, p_ref):
    x = x_ref[...]
    d1 = x - jnp.float32(0.4)
    d2 = x - jnp.float32(0.2)
    d1_sq = d1 * d1
    # The torch module also computes energy = -log(p_hat) and discards it; we
    # skip the dead computation (it would land on the idle EUP slot anyway).
    p_ref[...] = d1_sq * d1_sq - d2 * d2 + jnp.float32(0.6)


def _run_2d(x2d):
    """Run the kernel over a lane-dense (rows, 128) slab."""
    rows, lanes = x2d.shape
    # Full-array block for small inputs; fixed 1024-row tile otherwise (keeps
    # sublane dim a multiple of 8 and VMEM footprint bounded on every chip).
    tile_r = rows if rows <= _TILE_R else _TILE_R
    grid_r = pl.cdiv(rows, tile_r)
    return pl.pallas_call(
        _energy_kernel,
        out_shape=jax.ShapeDtypeStruct((rows, lanes), x2d.dtype),
        grid_spec=pl.GridSpec(
            grid=(grid_r,),
            in_specs=[pl.BlockSpec((tile_r, lanes), lambda i: (i, 0))],
            out_specs=pl.BlockSpec((tile_r, lanes), lambda i: (i, 0)),
        ),
        compiler_params=pltpu.CompilerParams(
            dimension_semantics=("parallel",),
            vmem_limit_bytes=32 * 1024 * 1024,
        ),
    )(x2d)


def energy_function(x):
    """x: float32 array of any shape (NCHW in the example). Returns p_hat, same shape."""
    orig_shape = x.shape
    n = x.size

    if n % _LANES == 0:
        # Fast path: contiguous reshape, zero extra HBM passes.
        rows = n // _LANES
        out2d = _run_2d(x.reshape(rows, _LANES))
        return out2d.reshape(orig_shape)

    # Fallback for sizes not divisible by 128 (not hit by the reference shape):
    # pad the flat view up to a lane multiple, run, and slice back.
    n_pad = ((n + _LANES - 1) // _LANES) * _LANES
    x_flat = jnp.pad(jnp.ravel(x), (0, n_pad - n))
    out2d = _run_2d(x_flat.reshape(n_pad // _LANES, _LANES))
    return out2d.reshape(-1)[:n].reshape(orig_shape)


if __name__ == "__main__":
    key = jax.random.PRNGKey(0)
    x = jax.random.normal(key, (2, 4, 16, 16), dtype=jnp.float32)

    p_hat = energy_function(x)
    jax.block_until_ready(p_hat)

    # Reference check in plain JAX.
    p_ref = (x - 0.4) ** 4 - (x - 0.2) ** 2 + 0.6
    assert p_hat.shape == x.shape
    assert jnp.allclose(p_hat, p_ref, atol=1e-5, rtol=1e-5)

    print("KERNEL_OK")
</pallas_src>

<mosaic_0001>
module attributes {stable_mosaic.version = 11 : i64} {
  func.func @_energy_kernel(%arg0: i32, %arg1: memref<16x128xf32, #tpu.memory_space<vmem>>, %arg2: memref<16x128xf32, #tpu.memory_space<vmem>>) attributes {dimension_semantics = [#tpu.dimension_semantics<parallel>], iteration_bounds = array<i64: 1>, scalar_prefetch = 0 : i64, scratch_operands = 0 : i64, tpu.core_type = #tpu.core_type<tc>, window_params = [{transform_indices = @transform_0, window_bounds = array<i64: 16, 128>}, {transform_indices = @transform_1, window_bounds = array<i64: 16, 128>}]} {
    %c0 = arith.constant 0 : index
    %c0_0 = arith.constant 0 : index
    %0 = vector.load %arg1[%c0, %c0_0] : memref<16x128xf32, #tpu.memory_space<vmem>>, vector<16x128xf32>
    %cst = arith.constant 4.000000e-01 : f32
    %1 = vector.broadcast %cst : f32 to vector<16x128xf32>
    %2 = arith.subf %0, %1 : vector<16x128xf32>
    %cst_1 = arith.constant 2.000000e-01 : f32
    %3 = vector.broadcast %cst_1 : f32 to vector<16x128xf32>
    %4 = arith.subf %0, %3 : vector<16x128xf32>
    %5 = arith.mulf %2, %2 : vector<16x128xf32>
    %6 = arith.mulf %5, %5 : vector<16x128xf32>
    %7 = arith.mulf %4, %4 : vector<16x128xf32>
    %8 = arith.subf %6, %7 : vector<16x128xf32>
    %cst_2 = arith.constant 6.000000e-01 : f32
    %9 = vector.broadcast %cst_2 : f32 to vector<16x128xf32>
    %10 = arith.addf %8, %9 : vector<16x128xf32>
    %c0_3 = arith.constant 0 : index
    %c0_4 = arith.constant 0 : index
    %11 = vector.load %arg2[%c0_3, %c0_4] : memref<16x128xf32, #tpu.memory_space<vmem>>, vector<16x128xf32>
    tpu.vector_store %arg2[%c0_3, %c0_4], %10 {strides = array<i32>} : memref<16x128xf32, #tpu.memory_space<vmem>>, vector<16x128xf32>,
    return
  }
  func.func @transform_0(%arg0: i32) -> (i32, i32) {
    %c0_i32 = arith.constant 0 : i32
    %c0_i32_0 = arith.constant 0 : i32
    return %arg0, %c0_i32 : i32, i32
  }
  func.func @transform_1(%arg0: i32) -> (i32, i32) {
    %c0_i32 = arith.constant 0 : i32
    %c0_i32_0 = arith.constant 0 : i32
    return %arg0, %c0_i32 : i32, i32
  }
}

</mosaic_0001>

<llo_original>
// kernel: tpu_custom_call.1
$region0: #{tpu_custom_call.1}
  #allocation0 [shape = 'u32[]', space=smem, size = 0x4, offset = 0x4, fixed_abs, tag = 'smem constant byte address 0x4 - core index']
  #allocation1 [shape = 'u32[144,128]{1,0:T(1,128)}', space=vmem, size = 0x12000, scoped, tag = 'internal scratch']
  %s0 = inlined_call_operand.hbm [shape: f32[16,128], index: 0, kind: input, shape index: {}]
  %s1 = inlined_call_operand.hbm [shape: f32[16,128], index: 1, kind: output, shape index: {}]
  %s2 = sld [smem:[#allocation0]]
  $region18: #{tpu_custom_call.1} parent=0
    _
  %s4 = ssub.s32 1, %s2
  %s5 = scalar_select 0, %s4, %s2
  $region1: #{tpu_custom_call.1} parent=0
    #allocation2 [shape = 'u8[8192]{0}', space=vmem, size = 0x2000, scoped, tag = 'input window, operand 0, single buffered']
    #allocation3 [shape = 's32[1]{0}', space=sflag, size = 0x4, scoped, tag = 'scoped memory for tpu_custom_call.1']
    #allocation4 [shape = 's32[1]{0}', space=sflag, size = 0x4, scoped, tag = 'scoped memory for tpu_custom_call.1']
    #allocation5 [shape = 'u8[8192]{0}', space=vmem, size = 0x2000, scoped, tag = 'output window, operand 0, single buffered']
    %6 = vsyncpa [#allocation3], 0
    %7 = vsyncpa [#allocation4], 0
    // Predicated region
    $region2: #{tpu_custom_call.1} parent=1 // pred_check
      _
    $region3: #{tpu_custom_call.1} parent=1 // pred_check_branch
      %9 = sbr.rel (0) target = $region5
    $region4: #{tpu_custom_call.1} parent=1 // pred_region
      %s11 = ssub.s32 256, 256
      %12 = vsyncadd [#allocation3], %s11
      %s13 = sshll.u32 [#allocation2], 4
      %s14 = int_to_ptr.vmem [resolvable:$true] %s13
      %19 = dma.hbm_to_vmem [thread:$0]  %s0, 256, %s14, [#allocation3], 128, 128, 8
    $region5: #{tpu_custom_call.1} parent=1 // pred_fallthru
      _
    // Predicated region
    $region6: #{tpu_custom_call.1} parent=1 // pred_check
      _
    $region7: #{tpu_custom_call.1} parent=1 // pred_check_branch
      %21 = sbr.rel (0) target = $region9
    $region8: #{tpu_custom_call.1} parent=1 // pred_region
      %22 = dma.done [#allocation3], 256
    $region9: #{tpu_custom_call.1} parent=1 // pred_fallthru
      _
    %v23 = vld [vmem:[#allocation2] sm:$0xff]
    %v24 = vld [vmem:[#allocation2 + $0x8] sm:$0xff]
    %v25 = vsub.f32 %v23, 0.4
    %v26 = vsub.f32 %v24, 0.4
    %v27 = vsub.f32 %v23, 0.2
    %v28 = vsub.f32 %v24, 0.2
    %v29 = vmul.f32 %v25, %v25
    %v30 = vmul.f32 %v26, %v26
    %v31 = vmul.f32 %v29, %v29
    %v32 = vmul.f32 %v30, %v30
    %v33 = vmul.f32 %v27, %v27
    %v34 = vmul.f32 %v28, %v28
    %v35 = vsub.f32 %v31, %v33
    %v36 = vsub.f32 %v32, %v34
    %v37 = vadd.f32 %v35, 0.6
    %v38 = vadd.f32 %v36, 0.6
    %39 = vst [vmem:[#allocation5] sm:$0xff] %v37
    %40 = vst [vmem:[#allocation5 + $0x8] sm:$0xff] %v38
    // Predicated region
    $region10: #{tpu_custom_call.1} parent=1 // pred_check
      _
    $region11: #{tpu_custom_call.1} parent=1 // pred_check_branch
      %42 = sbr.rel (0) target = $region13
    $region12: #{tpu_custom_call.1} parent=1 // pred_region
      %s44 = ssub.s32 256, 256
      %45 = vsyncadd [#allocation4], %s44
      %s46 = sshll.u32 [#allocation5], 4
      %s47 = int_to_ptr.vmem [resolvable:$true] %s46
      %52 = dma.vmem_to_hbm [thread:$0]  %s47, 256, %s1, [#allocation4], 128, 128, 8
    $region13: #{tpu_custom_call.1} parent=1 // pred_fallthru
      _
    // Predicated region
    $region14: #{tpu_custom_call.1} parent=1 // pred_check
      _
    $region15: #{tpu_custom_call.1} parent=1 // pred_check_branch
      %54 = sbr.rel (0) target = $region17
    $region16: #{tpu_custom_call.1} parent=1 // pred_region
      %55 = dma.done [#allocation4], 256
    $region17: #{tpu_custom_call.1} parent=1 // pred_fallthru
      _
    %56 = vsyncpa [#allocation3], 1
    %57 = vsyncpa [#allocation4], 1

</llo_original>
